<compile_context>
chip_gen: v7x
topology: tpu7x:2x2x1
jax: 0.10.0
libtpu: 0.0.40
codegen_flags: <defaults>
</compile_context>

<pallas_src>
import functools
import math

import jax
import jax.numpy as jnp
from jax import lax
from jax.experimental import pallas as pl
from jax.experimental.pallas import tpu as pltpu

_NEG_FILL = -1e30  # finite "-inf": loses every max(), avoids inf arithmetic


# ---------------------------------------------------------------------------
# Kernel 1: row-wise L2 normalization with sqrt(1/t) folded in.
# ---------------------------------------------------------------------------
def _normalize_kernel(x_ref, o_ref, *, scale):
    x = x_ref[...].astype(jnp.float32)
    ss = jnp.sum(x * x, axis=1, keepdims=True)
    # F.normalize(dim=1): x / max(||x||, 1e-12) == x * rsqrt(max(ss, 1e-24));
    # the extra sqrt(1/t) makes the Gram of the result equal sim / t directly.
    o_ref[...] = x * (lax.rsqrt(jnp.maximum(ss, 1e-24)) * scale)


# ---------------------------------------------------------------------------
# Kernel 2: tiled Gram matrix + online cross entropy / accuracy.
#   grid = (row tiles ["parallel"], column tiles ["arbitrary"])
# ---------------------------------------------------------------------------
def _simclr_kernel(zl_ref, zr_ref, loss_ref, corr_ref,
                   sumexp, maxneg, pos, diag, *, inv_t):
    TM = zl_ref.shape[0]
    TN = zr_ref.shape[0]
    i = pl.program_id(0)
    k = pl.program_id(1)
    nk = pl.num_programs(1)

    @pl.when(k == 0)
    def _init():
        sumexp[...] = jnp.zeros_like(sumexp)
        maxneg[...] = jnp.full_like(maxneg, _NEG_FILL)

    # (TM, TN) tile of sim = z z^T / t (1/t already folded into z).
    sim = lax.dot_general(zl_ref[...], zr_ref[...],
                          (((1,), (1,)), ((), ())),
                          preferred_element_type=jnp.float32)

    # Constant stabilizer m = 1/t: the row max is the diagonal ||z_r||^2 = 1/t,
    # so exp(sim - 1/t) <= 1 and the hot path needs no mask / running max.
    sumexp[...] += jnp.sum(jnp.exp(sim - inv_t), axis=1, keepdims=True)

    # Column tile holding this row tile's diagonal & positives.  Rows are
    # interleaved (zi_0, zj_0, zi_1, ...), so partner(r) = r ^ 1 and both
    # excluded columns of every row live in this one tile (TN % TM == 0).
    k_diag = (i * TM) // TN

    @pl.when(k == k_diag)
    def _diag_tile():
        row = lax.broadcasted_iota(jnp.int32, (TM, TN), 0) + i * TM
        col = lax.broadcasted_iota(jnp.int32, (TM, TN), 1) + k * TN
        x = row ^ col
        excl = x < 2                                    # self or partner
        masked = jnp.where(excl, _NEG_FILL, sim)
        maxneg[...] = jnp.maximum(maxneg[...],
                                  jnp.max(masked, axis=1, keepdims=True))
        pos[...] = jnp.sum(jnp.where(x == 1, sim, 0.0), axis=1, keepdims=True)
        diag[...] = jnp.sum(jnp.where(x == 0, sim, 0.0), axis=1, keepdims=True)

    @pl.when(k != k_diag)
    def _off_diag_tile():
        maxneg[...] = jnp.maximum(maxneg[...],
                                  jnp.max(sim, axis=1, keepdims=True))

    @pl.when(k == nk - 1)
    def _finalize():
        p = pos[...]
        # CE denominator over [pos, negatives]: exp(pos) cancels the excluded
        # partner column exactly, so only the diagonal term is removed.
        denom = sumexp[...] - jnp.exp(diag[...] - inv_t)
        loss_rows = inv_t + jnp.log(denom) - p
        corr_rows = (p >= maxneg[...]).astype(jnp.float32)  # argmax==0 tie rule
        loss_ref[...] = jnp.broadcast_to(
            jnp.sum(loss_rows).reshape(1, 1, 1), loss_ref.shape)
        corr_ref[...] = jnp.broadcast_to(
            jnp.sum(corr_rows).reshape(1, 1, 1), corr_ref.shape)


# ---------------------------------------------------------------------------
# Tile selection.
# ---------------------------------------------------------------------------
def _pick_row_tile(n, target=256):
    best = None
    for d in range(8, min(n, target) + 1, 8):
        if n % d == 0:
            best = d
    return best if best is not None else n


def _pick_col_tile(n, tm, target=1024):
    mult = max(target // tm, 1)
    while mult > 1 and n % (mult * tm) != 0:
        mult -= 1
    return mult * tm


def simclr_loss(output, temperature=0.1, row_block=None, col_block=None):
    """output: (B, 2, D) -> (acc, loss), matching SimCLRLoss.forward."""
    B, two, D = output.shape
    assert two == 2
    N = 2 * B
    inv_t = 1.0 / float(temperature)

    # Free contiguous reshape: interleaved rows [zi_0, zj_0, zi_1, zj_1, ...].
    z_raw = output.reshape(N, D)

    # ---- kernel 1: L2-normalize rows, fold sqrt(1/t).
    tmn = _pick_row_tile(N)
    z_n = pl.pallas_call(
        functools.partial(_normalize_kernel, scale=math.sqrt(inv_t)),
        grid=(N // tmn,),
        out_shape=jax.ShapeDtypeStruct((N, D), jnp.float32),
        in_specs=[pl.BlockSpec((tmn, D), lambda i: (i, 0))],
        out_specs=pl.BlockSpec((tmn, D), lambda i: (i, 0)),
        compiler_params=pltpu.CompilerParams(
            dimension_semantics=("parallel",)),
    )(z_raw)

    # ---- kernel 2: tiled similarity + online CE / accuracy.
    TM = row_block if row_block is not None else _pick_row_tile(N)
    TN = col_block if col_block is not None else _pick_col_tile(N, TM)
    assert N % TM == 0 and N % TN == 0 and TN % TM == 0, (TM, TN, N)
    nr, nc = N // TM, N // TN

    # Footprint: double-buffered (TM,D)+(TN,D) inputs, a few (TM,TN) f32
    # temporaries, four lane-padded (TM,128) scratch columns, tiny outputs.
    vmem_est = 4 * (2 * TM * D + 2 * TN * D + 8 * TM * TN + 4 * TM * 128)
    vmem_limit = int(min(max(2 * vmem_est, 32 << 20), 64 << 20))

    loss_part, corr_part = pl.pallas_call(
        functools.partial(_simclr_kernel, inv_t=inv_t),
        grid=(nr, nc),
        out_shape=(jax.ShapeDtypeStruct((nr, 8, 128), jnp.float32),
                   jax.ShapeDtypeStruct((nr, 8, 128), jnp.float32)),
        in_specs=[pl.BlockSpec((TM, D), lambda i, k: (i, 0)),   # LHS row tile
                  pl.BlockSpec((TN, D), lambda i, k: (k, 0))],  # streamed RHS
        out_specs=(pl.BlockSpec((1, 8, 128), lambda i, k: (i, 0, 0)),
                   pl.BlockSpec((1, 8, 128), lambda i, k: (i, 0, 0))),
        scratch_shapes=[pltpu.VMEM((TM, 1), jnp.float32),   # running sum(exp)
                        pltpu.VMEM((TM, 1), jnp.float32),   # running max(neg)
                        pltpu.VMEM((TM, 1), jnp.float32),   # pos
                        pltpu.VMEM((TM, 1), jnp.float32)],  # diag
        compiler_params=pltpu.CompilerParams(
            dimension_semantics=("parallel", "arbitrary"),
            vmem_limit_bytes=vmem_limit),
    )(z_n, z_n)

    inv_n = 1.0 / N
    loss = jnp.sum(loss_part[:, 0, 0]) * inv_n
    acc = jnp.sum(corr_part[:, 0, 0]) * inv_n
    return acc, loss


def _reference(out, t=0.1):
    """Pure-JAX mirror of the PyTorch SimCLRLoss module."""
    zi, zj = out[:, 0], out[:, 1]
    nfn = lambda x: x / jnp.maximum(
        jnp.linalg.norm(x, axis=1, keepdims=True), 1e-12)
    z = jnp.concatenate([nfn(zi), nfn(zj)], axis=0)
    sim = jnp.matmul(z, z.T, precision="highest") / t
    b = out.shape[0]
    pos = jnp.concatenate([jnp.diagonal(sim, b), jnp.diagonal(sim, -b)])
    n = 2 * b
    r = jnp.arange(n)
    excl = (r[:, None] == r[None, :]) | (r[None, :] == (r[:, None] + b) % n)
    negm = jnp.where(excl, -jnp.inf, sim)
    logits = jnp.concatenate([pos[:, None], negm], axis=1)
    lse = jax.scipy.special.logsumexp(logits, axis=1)
    loss = jnp.mean(lse - logits[:, 0])
    acc = jnp.mean((jnp.argmax(logits, axis=1) == 0).astype(jnp.float32))
    return acc, loss


if __name__ == "__main__":
    key = jax.random.PRNGKey(0)
    B, D = 32, 128
    output = jax.random.normal(key, (B, 2, D), dtype=jnp.float32)  # (B, 2, D)

    racc, rloss = _reference(output, 0.1)

    # Small explicit tiles -> (4 row tiles x 2 column tiles): exercises the
    # init / diagonal-tile / off-diagonal / finalize paths and accumulation.
    acc, loss = simclr_loss(output, temperature=0.1, row_block=16, col_block=32)
    jax.block_until_ready((acc, loss))
    assert jnp.allclose(loss, rloss, rtol=1e-4, atol=1e-4), (loss, rloss)
    assert jnp.allclose(acc, racc, rtol=1e-5, atol=1e-5), (acc, racc)

    # Default tile selection path (single tile at this size).
    acc2, loss2 = simclr_loss(output, temperature=0.1)
    jax.block_until_ready((acc2, loss2))
    assert jnp.allclose(loss2, rloss, rtol=1e-4, atol=1e-4), (loss2, rloss)
    assert jnp.allclose(acc2, racc, rtol=1e-5, atol=1e-5), (acc2, racc)

    print("KERNEL_OK")
</pallas_src>

<mosaic_0001>
module attributes {stable_mosaic.version = 11 : i64} {
  func.func @_normalize_kernel(%arg0: i32, %arg1: memref<64x128xf32, #tpu.memory_space<vmem>>, %arg2: memref<64x128xf32, #tpu.memory_space<vmem>>) attributes {dimension_semantics = [#tpu.dimension_semantics<parallel>], iteration_bounds = array<i64: 1>, scalar_prefetch = 0 : i64, scratch_operands = 0 : i64, tpu.core_type = #tpu.core_type<tc>, window_params = [{transform_indices = @transform_0, window_bounds = array<i64: 64, 128>}, {transform_indices = @transform_1, window_bounds = array<i64: 64, 128>}]} {
    %c0 = arith.constant 0 : index
    %c0_0 = arith.constant 0 : index
    %0 = vector.load %arg1[%c0, %c0_0] : memref<64x128xf32, #tpu.memory_space<vmem>>, vector<64x128xf32>
    %1 = arith.mulf %0, %0 : vector<64x128xf32>
    %cst = arith.constant dense<0.000000e+00> : vector<64xf32>
    %2 = vector.multi_reduction <add>, %1, %cst [1] : vector<64x128xf32> to vector<64xf32>
    %3 = vector.shape_cast %2 : vector<64xf32> to vector<64x1xf32>
    %cst_1 = arith.constant 1.000000e-24 : f32
    %4 = vector.broadcast %cst_1 : f32 to vector<64x1xf32>
    %5 = arith.maximumf %3, %4 : vector<64x1xf32>
    %6 = math.rsqrt %5 : vector<64x1xf32>
    %cst_2 = arith.constant 3.1622777 : f32
    %7 = vector.broadcast %cst_2 : f32 to vector<64x1xf32>
    %8 = arith.mulf %6, %7 : vector<64x1xf32>
    %9 = vector.broadcast %8 : vector<64x1xf32> to vector<64x128xf32>
    %10 = arith.mulf %0, %9 : vector<64x128xf32>
    %c0_3 = arith.constant 0 : index
    %c0_4 = arith.constant 0 : index
    %11 = vector.load %arg2[%c0_3, %c0_4] : memref<64x128xf32, #tpu.memory_space<vmem>>, vector<64x128xf32>
    tpu.vector_store %arg2[%c0_3, %c0_4], %10 {strides = array<i32>} : memref<64x128xf32, #tpu.memory_space<vmem>>, vector<64x128xf32>,
    return
  }
  func.func @transform_0(%arg0: i32) -> (i32, i32) {
    %c0_i32 = arith.constant 0 : i32
    %c0_i32_0 = arith.constant 0 : i32
    return %arg0, %c0_i32 : i32, i32
  }
  func.func @transform_1(%arg0: i32) -> (i32, i32) {
    %c0_i32 = arith.constant 0 : i32
    %c0_i32_0 = arith.constant 0 : i32
    return %arg0, %c0_i32 : i32, i32
  }
}

</mosaic_0001>

<llo_original>
// kernel: tpu_custom_call.1
$region0: #{tpu_custom_call.1}
  #allocation0 [shape = 'u32[]', space=smem, size = 0x4, offset = 0x4, fixed_abs, tag = 'smem constant byte address 0x4 - core index']
  #allocation1 [shape = 'u32[144,128]{1,0:T(1,128)}', space=vmem, size = 0x12000, scoped, tag = 'internal scratch']
  %s0 = inlined_call_operand.hbm [shape: f32[64,128], index: 0, kind: input, shape index: {}]
  %s1 = inlined_call_operand.hbm [shape: f32[64,128], index: 1, kind: output, shape index: {}]
  %s2 = sld [smem:[#allocation0]]
  $region18: #{tpu_custom_call.1} parent=0
    _
  %s4 = ssub.s32 1, %s2
  %s5 = scalar_select 0, %s4, %s2
  $region1: #{tpu_custom_call.1} parent=0
    #allocation2 [shape = 'u8[32768]{0}', space=vmem, size = 0x8000, scoped, tag = 'input window, operand 0, single buffered']
    #allocation3 [shape = 's32[1]{0}', space=sflag, size = 0x4, scoped, tag = 'scoped memory for tpu_custom_call.1']
    #allocation4 [shape = 's32[1]{0}', space=sflag, size = 0x4, scoped, tag = 'scoped memory for tpu_custom_call.1']
    #allocation5 [shape = 'u8[32768]{0}', space=vmem, size = 0x8000, scoped, tag = 'output window, operand 0, single buffered']
    %6 = vsyncpa [#allocation3], 0
    %7 = vsyncpa [#allocation4], 0
    // Predicated region
    $region2: #{tpu_custom_call.1} parent=1 // pred_check
      _
    $region3: #{tpu_custom_call.1} parent=1 // pred_check_branch
      %9 = sbr.rel (0) target = $region5
    $region4: #{tpu_custom_call.1} parent=1 // pred_region
      %s11 = ssub.s32 1024, 1024
      %12 = vsyncadd [#allocation3], %s11
      %s13 = sshll.u32 [#allocation2], 4
      %s14 = int_to_ptr.vmem [resolvable:$true] %s13
      %19 = dma.hbm_to_vmem [thread:$0]  %s0, 1024, %s14, [#allocation3], 128, 128, 8
    $region5: #{tpu_custom_call.1} parent=1 // pred_fallthru
      _
    // Predicated region
    $region6: #{tpu_custom_call.1} parent=1 // pred_check
      _
    $region7: #{tpu_custom_call.1} parent=1 // pred_check_branch
      %21 = sbr.rel (0) target = $region9
    $region8: #{tpu_custom_call.1} parent=1 // pred_region
      %22 = dma.done [#allocation3], 1024
    $region9: #{tpu_custom_call.1} parent=1 // pred_fallthru
      _
    %v23 = vld [vmem:[#allocation2] sm:$0xff]
    %v24 = vld [vmem:[#allocation2 + $0x8] sm:$0xff]
    %v25 = vld [vmem:[#allocation2 + $0x10] sm:$0xff]
    %v26 = vld [vmem:[#allocation2 + $0x18] sm:$0xff]
    %v27 = vld [vmem:[#allocation2 + $0x20] sm:$0xff]
    %v28 = vld [vmem:[#allocation2 + $0x28] sm:$0xff]
    %v29 = vld [vmem:[#allocation2 + $0x30] sm:$0xff]
    %v30 = vld [vmem:[#allocation2 + $0x38] sm:$0xff]
    %v31 = vmul.f32 %v23, %v23
    %v32 = vmul.f32 %v24, %v24
    %v33 = vmul.f32 %v25, %v25
    %v34 = vmul.f32 %v26, %v26
    %v35 = vmul.f32 %v27, %v27
    %v36 = vmul.f32 %v28, %v28
    %v37 = vmul.f32 %v29, %v29
    %v38 = vmul.f32 %v30, %v30
    %39 = vadd.xlane.f32.xlu0 %v31
    %v40 = vpop.xlane.xlu0 %39
    %41 = vadd.xlane.f32.xlu0 %v32
    %v42 = vpop.xlane.xlu0 %41
    %43 = vadd.xlane.f32.xlu0 %v33
    %v44 = vpop.xlane.xlu0 %43
    %45 = vadd.xlane.f32.xlu0 %v34
    %v46 = vpop.xlane.xlu0 %45
    %47 = vadd.xlane.f32.xlu0 %v35
    %v48 = vpop.xlane.xlu0 %47
    %49 = vadd.xlane.f32.xlu0 %v36
    %v50 = vpop.xlane.xlu0 %49
    %51 = vadd.xlane.f32.xlu0 %v37
    %v52 = vpop.xlane.xlu0 %51
    %53 = vadd.xlane.f32.xlu0 %v38
    %v54 = vpop.xlane.xlu0 %53
    %v55 = vmax.f32 %v40, 1e-24
    %v56 = vmax.f32 %v42, 1e-24
    %v57 = vmax.f32 %v44, 1e-24
    %v58 = vmax.f32 %v46, 1e-24
    %v59 = vmax.f32 %v48, 1e-24
    %v60 = vmax.f32 %v50, 1e-24
    %v61 = vmax.f32 %v52, 1e-24
    %v62 = vmax.f32 %v54, 1e-24
    %v63 = vrsqrt.pop %v55
    %v64 = vrsqrt.pop %v56
    %v65 = vrsqrt.pop %v57
    %v66 = vrsqrt.pop %v58
    %v67 = vrsqrt.pop %v59
    %v68 = vrsqrt.pop %v60
    %v69 = vrsqrt.pop %v61
    %v70 = vrsqrt.pop %v62
    %v71 = vmul.f32 %v63, 3.1622777
    %v72 = vmul.f32 %v64, 3.1622777
    %v73 = vmul.f32 %v65, 3.1622777
    %v74 = vmul.f32 %v66, 3.1622777
    %v75 = vmul.f32 %v67, 3.1622777
    %v76 = vmul.f32 %v68, 3.1622777
    %v77 = vmul.f32 %v69, 3.1622777
    %v78 = vmul.f32 %v70, 3.1622777
    %v79 = vmul.f32 %v23, %v71
    %v80 = vmul.f32 %v24, %v72
    %v81 = vmul.f32 %v25, %v73
    %v82 = vmul.f32 %v26, %v74
    %v83 = vmul.f32 %v27, %v75
    %v84 = vmul.f32 %v28, %v76
    %v85 = vmul.f32 %v29, %v77
    %v86 = vmul.f32 %v30, %v78
    %87 = vst [vmem:[#allocation5] sm:$0xff] %v79
    %88 = vst [vmem:[#allocation5 + $0x8] sm:$0xff] %v80
    %89 = vst [vmem:[#allocation5 + $0x10] sm:$0xff] %v81
    %90 = vst [vmem:[#allocation5 + $0x18] sm:$0xff] %v82
    %91 = vst [vmem:[#allocation5 + $0x20] sm:$0xff] %v83
    %92 = vst [vmem:[#allocation5 + $0x28] sm:$0xff] %v84
    %93 = vst [vmem:[#allocation5 + $0x30] sm:$0xff] %v85
    %94 = vst [vmem:[#allocation5 + $0x38] sm:$0xff] %v86
    // Predicated region
    $region10: #{tpu_custom_call.1} parent=1 // pred_check
      _
    $region11: #{tpu_custom_call.1} parent=1 // pred_check_branch
      %96 = sbr.rel (0) target = $region13
    $region12: #{tpu_custom_call.1} parent=1 // pred_region
      %s98 = ssub.s32 1024, 1024
      %99 = vsyncadd [#allocation4], %s98
      %s100 = sshll.u32 [#allocation5], 4
      %s101 = int_to_ptr.vmem [resolvable:$true] %s100
      %106 = dma.vmem_to_hbm [thread:$0]  %s101, 1024, %s1, [#allocation4], 128, 128, 8
    $region13: #{tpu_custom_call.1} parent=1 // pred_fallthru
      _
    // Predicated region
    $region14: #{tpu_custom_call.1} parent=1 // pred_check
      _
    $region15: #{tpu_custom_call.1} parent=1 // pred_check_branch
      %108 = sbr.rel (0) target = $region17
    $region16: #{tpu_custom_call.1} parent=1 // pred_region
      %109 = dma.done [#allocation4], 1024
    $region17: #{tpu_custom_call.1} parent=1 // pred_fallthru
      _
    %110 = vsyncpa [#allocation3], 1
    %111 = vsyncpa [#allocation4], 1

</llo_original>
